<compile_context>
chip_gen: v6e
topology: v6e:2x2x1
jax: 0.10.0
libtpu: 0.0.40
codegen_flags: <defaults>
</compile_context>

<pallas_src>
import functools
import math

import jax
import jax.numpy as jnp
from jax import lax
from jax.experimental import pallas as pl
from jax.experimental.pallas import tpu as pltpu


# Channel order of the 3x3 taps (dh, dw) inside the im2col buffer / weight matrix.
_TAP_ORDER = ((0, 0), (0, 1), (1, 0), (1, 1), (0, 2), (1, 2), (2, 0), (2, 1), (2, 2))


def _downsample_conv_kernel(xm_ref, xh_ref, w_ref, b_ref, o_ref, col_ref):
    """One (batch, row-tile) step of pad(0,1,0,1) + Conv2d(C, C, 3, stride=2).

    xm_ref : (TH,   Wo+1, 4*Cin)  space-to-depth rows [r*TH, (r+1)*TH)        (bf16)
    xh_ref : (1,    Wo+1, 4*Cin)  halo row (r+1)*TH                            (bf16)
    w_ref  : (9*Cin, Cout)        im2col-ordered conv weights                  (bf16)
    b_ref  : (1, Cout)            bias                                          (f32)
    o_ref  : (TH, Wo, Cout)       output tile (lane-dense, Cout on lanes)
    col_ref: (TH*Wo, 9*Cin)       VMEM scratch: im2col buffer                  (bf16)
    """
    TH, Wo, Cout = o_ref.shape
    C = xm_ref.shape[-1] // 4
    M = TH * Wo

    # Row tile plus its one-row halo: (TH+1, Wo+1, 4*Cin).
    x = jnp.concatenate([xm_ref[...], xh_ref[...]], axis=0)

    # Build the im2col buffer ONCE in VMEM (unit-stride slabs; lane offsets are
    # multiples of Cin).  xs channel blocks are the 2x2 parity planes:
    #   [0:C]  = xp[2i,   2j]     [C:2C] = xp[2i,   2j+1]
    #   [2C:3C]= xp[2i+1, 2j]     [3C:4C]= xp[2i+1, 2j+1]
    # so the 9 taps, in _TAP_ORDER, are laid out along K as:
    #   [(0,0) (0,1) (1,0) (1,1) | (0,2) | (1,2) | (2,0) (2,1) | (2,2)]
    col_ref[:, 0 * C:4 * C] = x[0:TH, 0:Wo, :].reshape(M, 4 * C)
    col_ref[:, 4 * C:5 * C] = x[0:TH, 1:Wo + 1, 0 * C:1 * C].reshape(M, C)
    col_ref[:, 5 * C:6 * C] = x[0:TH, 1:Wo + 1, 2 * C:3 * C].reshape(M, C)
    col_ref[:, 6 * C:8 * C] = x[1:TH + 1, 0:Wo, 0 * C:2 * C].reshape(M, 2 * C)
    col_ref[:, 8 * C:9 * C] = x[1:TH + 1, 1:Wo + 1, 0 * C:1 * C].reshape(M, C)

    # Single big-K MXU matmul (bf16 x bf16 -> f32 accumulation), bias fused.
    acc = jnp.dot(col_ref[...], w_ref[...], preferred_element_type=jnp.float32)
    acc = acc + b_ref[...]
    o_ref[...] = acc.reshape(TH, Wo, Cout).astype(o_ref.dtype)


def downsample_block(x_nchw, w_oihw, bias, *, block_h=None,
                     compute_dtype=jnp.bfloat16):
    """DownsampleBlock.forward: F.pad(x, (0,1,0,1)) -> Conv2d(C, C, 3, stride=2, pad=0).

    x_nchw : (B, C, H, W) float32, H and W even.
    w_oihw : (Cout, Cin, 3, 3) conv weight in PyTorch layout.
    bias   : (Cout,)
    returns: (B, Cout, H//2, W//2) in x_nchw.dtype.
    """
    B, Cin, H, W = x_nchw.shape
    Cout, Cin_w, KH, KW = w_oihw.shape
    assert (Cin_w, KH, KW) == (Cin, 3, 3)
    assert H % 2 == 0 and W % 2 == 0, "H and W must be even"
    Ho, Wo = H // 2, W // 2
    Hos, Wos = Ho + 1, Wo + 1

    # ---- wrapper-side layout plumbing (pure XLA, no compute hoisted) -----------
    # NCHW -> NHWC, zero-pad bottom/right.  The reference pads by 1; one extra zero
    # row/col is added only so the 2x2 space-to-depth is exact -- those extra
    # elements are never read by any conv tap, so the result is unchanged.
    x = jnp.transpose(x_nchw, (0, 2, 3, 1))
    xp = jnp.pad(x, ((0, 0), (0, 2), (0, 2), (0, 0)))
    # 2x2 space-to-depth: xs[b, i, j, (rp*2 + cp)*Cin + c] = xp[b, 2i+rp, 2j+cp, c].
    xs = xp.reshape(B, Hos, 2, Wos, 2, Cin)
    xs = xs.transpose(0, 1, 3, 2, 4, 5).reshape(B, Hos, Wos, 4 * Cin)
    xs = xs.astype(compute_dtype)

    # Conv weight: PyTorch (Cout, Cin, kh, kw) -> im2col matrix (9*Cin, Cout),
    # row blocks ordered to match the kernel's tap layout (_TAP_ORDER).
    w_hwio = jnp.transpose(w_oihw, (2, 3, 1, 0))                  # (3, 3, Cin, Cout)
    w_mat = jnp.concatenate([w_hwio[dh, dw] for dh, dw in _TAP_ORDER], axis=0)
    w_mat = w_mat.astype(compute_dtype)
    b_mat = bias.reshape(1, Cout).astype(jnp.float32)

    # ---- tiling -----------------------------------------------------------------
    if block_h is None:
        block_h = next(th for th in range(min(Ho, 16), 0, -1) if Ho % th == 0)
    assert Ho % block_h == 0, "block_h must divide the output height"
    TH = block_h
    R = Ho // TH

    # Explicit VMEM budget: double-buffered ins/outs + resident weights + scratch,
    # capped at 48 MiB so the same tiling keeps headroom inside v7x's 64 MiB VMEM.
    isz = jnp.dtype(compute_dtype).itemsize
    osz = jnp.dtype(x_nchw.dtype).itemsize
    need = (2 * (TH * Wos * 4 * Cin * isz          # main input block
                 + Wos * 4 * Cin * isz             # halo block
                 + TH * Wo * Cout * osz)           # output block
            + 9 * Cin * Cout * isz + Cout * 4      # weights + bias (resident)
            + TH * Wo * 9 * Cin * isz)             # im2col scratch
    vmem_limit = int(min(max(2 * need, 8 << 20), 48 << 20))

    out_nhwc = pl.pallas_call(
        _downsample_conv_kernel,
        out_shape=jax.ShapeDtypeStruct((B, Ho, Wo, Cout), x_nchw.dtype),
        grid=(B, R),
        in_specs=[
            # main tile: xs rows [r*TH, (r+1)*TH)
            pl.BlockSpec((None, TH, Wos, 4 * Cin), lambda b, r: (b, r, 0, 0)),
            # one-row halo: xs row (r+1)*TH  (block size 1 -> block idx == row idx)
            pl.BlockSpec((None, 1, Wos, 4 * Cin),
                         lambda b, r: (b, (r + 1) * TH, 0, 0)),
            # grid-invariant weights / bias: same block every step -> stays resident
            pl.BlockSpec((9 * Cin, Cout), lambda b, r: (0, 0)),
            pl.BlockSpec((1, Cout), lambda b, r: (0, 0)),
        ],
        out_specs=pl.BlockSpec((None, TH, Wo, Cout), lambda b, r: (b, r, 0, 0)),
        scratch_shapes=[pltpu.VMEM((TH * Wo, 9 * Cin), compute_dtype)],
        compiler_params=pltpu.CompilerParams(
            dimension_semantics=("parallel", "parallel"),
            vmem_limit_bytes=vmem_limit),
    )(xs, xs, w_mat, b_mat)

    return jnp.transpose(out_nhwc, (0, 3, 1, 2))   # NHWC -> NCHW


if __name__ == "__main__":
    # DownsampleBlock keeps the channel count; C=128 keeps every matmul / store
    # lane-dense (K = 9*128 = 1152, N = 128).
    B, C, H, W = 2, 128, 16, 16

    key = jax.random.PRNGKey(0)
    kx, kw, kb = jax.random.split(key, 3)
    x = jax.random.normal(kx, (B, C, H, W), jnp.float32)
    w = jax.random.normal(kw, (C, C, 3, 3), jnp.float32) * (1.0 / math.sqrt(9 * C))
    b = 0.05 * jax.random.normal(kb, (C,), jnp.float32)

    # block_h=4 -> grid (B, R) = (2, 2): exercises multi-step pipelining and the
    # cross-tile halo path.
    fwd = jax.jit(functools.partial(downsample_block, block_h=4))
    out = jax.block_until_ready(fwd(x, w, b))

    assert out.shape == (B, C, H // 2, W // 2), out.shape
    assert bool(jnp.all(jnp.isfinite(out)))

    # Reference: XLA conv on identically bf16-rounded operands (padding (0,1,0,1),
    # VALID, stride 2) -- only f32 accumulation order differs from the kernel.
    xr = jnp.transpose(x, (0, 2, 3, 1)).astype(jnp.bfloat16).astype(jnp.float32)
    wr = jnp.transpose(w, (2, 3, 1, 0)).astype(jnp.bfloat16).astype(jnp.float32)
    xr = jnp.pad(xr, ((0, 0), (0, 1), (0, 1), (0, 0)))
    ref = lax.conv_general_dilated(
        xr, wr, window_strides=(2, 2), padding="VALID",
        dimension_numbers=("NHWC", "HWIO", "NHWC"),
        precision=lax.Precision.HIGHEST) + b.reshape(1, 1, 1, C)
    ref = jnp.transpose(ref, (0, 3, 1, 2))

    err = float(jnp.max(jnp.abs(out - ref)))
    assert err < 1e-2, f"max abs error vs reference conv: {err}"

    print("KERNEL_OK")
</pallas_src>

<mosaic_0001>
module attributes {stable_mosaic.version = 11 : i64} {
  func.func @_downsample_conv_kernel(%arg0: i32, %arg1: i32, %arg2: memref<1x4x9x512xbf16, #tpu.memory_space<vmem>>, %arg3: memref<1x1x9x512xbf16, #tpu.memory_space<vmem>>, %arg4: memref<1152x128xbf16, #tpu.memory_space<vmem>>, %arg5: memref<1x128xf32, #tpu.memory_space<vmem>>, %arg6: memref<1x4x8x128xf32, #tpu.memory_space<vmem>>, %arg7: memref<32x1152xbf16, #tpu.memory_space<vmem>>) attributes {dimension_semantics = [#tpu.dimension_semantics<parallel>, #tpu.dimension_semantics<parallel>], iteration_bounds = array<i64: 2, 2>, scalar_prefetch = 0 : i64, scratch_operands = 1 : i64, tpu.core_type = #tpu.core_type<tc>, window_params = [{transform_indices = @transform_0, window_bounds = array<i64: 1, 4, 9, 512>}, {transform_indices = @transform_1, window_bounds = array<i64: 1, 1, 9, 512>}, {pipeline_mode = #tpu.pipeline_mode<synchronous>, transform_indices = @transform_2, window_bounds = array<i64: 1152, 128>}, {pipeline_mode = #tpu.pipeline_mode<synchronous>, transform_indices = @transform_3, window_bounds = array<i64: 1, 128>}, {transform_indices = @transform_4, window_bounds = array<i64: 1, 4, 8, 128>}]} {
    %c0 = arith.constant 0 : index
    %c0_0 = arith.constant 0 : index
    %c0_1 = arith.constant 0 : index
    %c0_2 = arith.constant 0 : index
    %0 = vector.load %arg2[%c0, %c0_0, %c0_1, %c0_2] : memref<1x4x9x512xbf16, #tpu.memory_space<vmem>>, vector<1x4x9x512xbf16>
    %1 = vector.shape_cast %0 : vector<1x4x9x512xbf16> to vector<4x9x512xbf16>
    %c0_3 = arith.constant 0 : index
    %c0_4 = arith.constant 0 : index
    %c0_5 = arith.constant 0 : index
    %c0_6 = arith.constant 0 : index
    %2 = vector.load %arg3[%c0_3, %c0_4, %c0_5, %c0_6] : memref<1x1x9x512xbf16, #tpu.memory_space<vmem>>, vector<1x1x9x512xbf16>
    %3 = vector.shape_cast %2 : vector<1x1x9x512xbf16> to vector<1x9x512xbf16>
    %4 = tpu.concatenate %1, %3 in 0 : vector<4x9x512xbf16>, vector<1x9x512xbf16> -> vector<5x9x512xbf16>
    %5 = vector.extract_strided_slice %4 {offsets = [0, 0, 0], sizes = [4, 8, 512], strides = [1, 1, 1]} : vector<5x9x512xbf16> to vector<4x8x512xbf16>
    %6 = vector.shape_cast %5 : vector<4x8x512xbf16> to vector<32x512xbf16>
    %c0_7 = arith.constant 0 : index
    %c0_8 = arith.constant 0 : index
    %7 = vector.load %arg7[%c0_7, %c0_8] : memref<32x1152xbf16, #tpu.memory_space<vmem>>, vector<32x512xbf16>
    tpu.vector_store %arg7[%c0_7, %c0_8], %6 {strides = array<i32>} : memref<32x1152xbf16, #tpu.memory_space<vmem>>, vector<32x512xbf16>,
    %8 = vector.extract_strided_slice %4 {offsets = [0, 1, 0], sizes = [4, 8, 128], strides = [1, 1, 1]} : vector<5x9x512xbf16> to vector<4x8x128xbf16>
    %9 = vector.shape_cast %8 : vector<4x8x128xbf16> to vector<32x128xbf16>
    %c0_9 = arith.constant 0 : index
    %c512 = arith.constant 512 : index
    %10 = vector.load %arg7[%c0_9, %c512] : memref<32x1152xbf16, #tpu.memory_space<vmem>>, vector<32x128xbf16>
    tpu.vector_store %arg7[%c0_9, %c512], %9 {strides = array<i32>} : memref<32x1152xbf16, #tpu.memory_space<vmem>>, vector<32x128xbf16>,
    %11 = vector.extract_strided_slice %4 {offsets = [0, 1, 256], sizes = [4, 8, 128], strides = [1, 1, 1]} : vector<5x9x512xbf16> to vector<4x8x128xbf16>
    %12 = vector.shape_cast %11 : vector<4x8x128xbf16> to vector<32x128xbf16>
    %c0_10 = arith.constant 0 : index
    %c640 = arith.constant 640 : index
    %13 = vector.load %arg7[%c0_10, %c640] : memref<32x1152xbf16, #tpu.memory_space<vmem>>, vector<32x128xbf16>
    tpu.vector_store %arg7[%c0_10, %c640], %12 {strides = array<i32>} : memref<32x1152xbf16, #tpu.memory_space<vmem>>, vector<32x128xbf16>,
    %14 = vector.extract_strided_slice %4 {offsets = [1, 0, 0], sizes = [4, 8, 256], strides = [1, 1, 1]} : vector<5x9x512xbf16> to vector<4x8x256xbf16>
    %15 = vector.shape_cast %14 : vector<4x8x256xbf16> to vector<32x256xbf16>
    %c0_11 = arith.constant 0 : index
    %c768 = arith.constant 768 : index
    %16 = vector.load %arg7[%c0_11, %c768] : memref<32x1152xbf16, #tpu.memory_space<vmem>>, vector<32x256xbf16>
    tpu.vector_store %arg7[%c0_11, %c768], %15 {strides = array<i32>} : memref<32x1152xbf16, #tpu.memory_space<vmem>>, vector<32x256xbf16>,
    %17 = vector.extract_strided_slice %4 {offsets = [1, 1, 0], sizes = [4, 8, 128], strides = [1, 1, 1]} : vector<5x9x512xbf16> to vector<4x8x128xbf16>
    %18 = vector.shape_cast %17 : vector<4x8x128xbf16> to vector<32x128xbf16>
    %c0_12 = arith.constant 0 : index
    %c1024 = arith.constant 1024 : index
    %19 = vector.load %arg7[%c0_12, %c1024] : memref<32x1152xbf16, #tpu.memory_space<vmem>>, vector<32x128xbf16>
    tpu.vector_store %arg7[%c0_12, %c1024], %18 {strides = array<i32>} : memref<32x1152xbf16, #tpu.memory_space<vmem>>, vector<32x128xbf16>,
    %c0_13 = arith.constant 0 : index
    %c0_14 = arith.constant 0 : index
    %20 = vector.load %arg7[%c0_13, %c0_14] : memref<32x1152xbf16, #tpu.memory_space<vmem>>, vector<32x1152xbf16>
    %c0_15 = arith.constant 0 : index
    %c0_16 = arith.constant 0 : index
    %21 = vector.load %arg4[%c0_15, %c0_16] : memref<1152x128xbf16, #tpu.memory_space<vmem>>, vector<1152x128xbf16>
    %cst = arith.constant dense<0.000000e+00> : vector<32x128xf32>
    %22 = tpu.matmul %20, %21, %cst {dimension_numbers = #tpu.dot_dimension_numbers<[1], [0], [0], [1], [0, 0, 1, 1], [], []>} : vector<32x1152xbf16>, vector<1152x128xbf16>, vector<32x128xf32> -> vector<32x128xf32>
    %c0_17 = arith.constant 0 : index
    %c0_18 = arith.constant 0 : index
    %23 = vector.load %arg5[%c0_17, %c0_18] : memref<1x128xf32, #tpu.memory_space<vmem>>, vector<1x128xf32>
    %24 = vector.broadcast %23 : vector<1x128xf32> to vector<32x128xf32>
    %25 = arith.addf %22, %24 : vector<32x128xf32>
    %26 = vector.shape_cast %25 : vector<32x128xf32> to vector<4x8x128xf32>
    %c0_19 = arith.constant 0 : index
    %c0_20 = arith.constant 0 : index
    %c0_21 = arith.constant 0 : index
    %c0_22 = arith.constant 0 : index
    %27 = vector.load %arg6[%c0_19, %c0_20, %c0_21, %c0_22] : memref<1x4x8x128xf32, #tpu.memory_space<vmem>>, vector<1x4x8x128xf32>
    %28 = vector.shape_cast %27 : vector<1x4x8x128xf32> to vector<4x8x128xf32>
    %29 = vector.shape_cast %26 : vector<4x8x128xf32> to vector<1x4x8x128xf32>
    tpu.vector_store %arg6[%c0_19, %c0_20, %c0_21, %c0_22], %29 {strides = array<i32>} : memref<1x4x8x128xf32, #tpu.memory_space<vmem>>, vector<1x4x8x128xf32>,
    return
  }
  func.func @transform_0(%arg0: i32, %arg1: i32) -> (i32, i32, i32, i32) {
    %c0_i32 = arith.constant 0 : i32
    %c0_i32_0 = arith.constant 0 : i32
    %c0_i32_1 = arith.constant 0 : i32
    return %arg0, %arg1, %c0_i32, %c0_i32_0 : i32, i32, i32, i32
  }
  func.func @transform_1(%arg0: i32, %arg1: i32) -> (i32, i32, i32, i32) {
    %c1_i32 = arith.constant 1 : i32
    %0 = arith.addi %arg1, %c1_i32 : i32
    %c4_i32 = arith.constant 4 : i32
    %1 = arith.muli %0, %c4_i32 : i32
    %c0_i32 = arith.constant 0 : i32
    %c0_i32_0 = arith.constant 0 : i32
    %c0_i32_1 = arith.constant 0 : i32
    return %arg0, %1, %c0_i32, %c0_i32_0 : i32, i32, i32, i32
  }
  func.func @transform_2(%arg0: i32, %arg1: i32) -> (i32, i32) {
    %c0_i32 = arith.constant 0 : i32
    %c0_i32_0 = arith.constant 0 : i32
    %c0_i32_1 = arith.constant 0 : i32
    return %c0_i32, %c0_i32_0 : i32, i32
  }
  func.func @transform_3(%arg0: i32, %arg1: i32) -> (i32, i32) {
    %c0_i32 = arith.constant 0 : i32
    %c0_i32_0 = arith.constant 0 : i32
    %c0_i32_1 = arith.constant 0 : i32
    return %c0_i32, %c0_i32_0 : i32, i32
  }
  func.func @transform_4(%arg0: i32, %arg1: i32) -> (i32, i32, i32, i32) {
    %c0_i32 = arith.constant 0 : i32
    %c0_i32_0 = arith.constant 0 : i32
    %c0_i32_1 = arith.constant 0 : i32
    return %arg0, %arg1, %c0_i32, %c0_i32_0 : i32, i32, i32, i32
  }
}

</mosaic_0001>

<llo_original>
// kernel: downsample_block.1
$region0: #{downsample_block.1}
  #allocation0 [shape = 'u32[]', space=smem, size = 0x4, offset = 0x4, fixed_abs, tag = 'smem constant byte address 0x4 - core index']
  #allocation1 [shape = 'u32[144,128]{1,0:T(1,128)}', space=vmem, size = 0x12000, scoped, tag = 'internal scratch']
  #allocation2 [shape = 'bf16[32,1152]{1,0:T(8,128)(2,1)}', space=vmem, size = 0x12000, scoped, tag = 'scratch operand']
  %s0 = inlined_call_operand.vmem [shape: bf16[2,9,9,512], index: 0, kind: input, shape index: {}, may-alias: {0,1}]
  %s1 = inlined_call_operand.vmem [shape: bf16[2,9,9,512], index: 1, kind: input, shape index: {}, may-alias: {0,1}]
  %s2 = inlined_call_operand.vmem [shape: bf16[1152,128], index: 2, kind: input, shape index: {}]
  %s3 = inlined_call_operand.vmem [shape: f32[1,128], index: 3, kind: input, shape index: {}]
  %s4 = inlined_call_operand.hbm [shape: f32[2,8,8,128], index: 4, kind: output, shape index: {}]
  %s5 = sld [smem:[#allocation0]]
  $region49: #{downsample_block.1} parent=0
    _
  %s7 = ssub.s32 1, %s5
  %s8 = scalar_select 0, %s7, %s5
  $region1: #{downsample_block.1} parent=0
    #allocation3 [shape = 'u8[32768]{0}', space=vmem, size = 0x8000, scoped, tag = 'output window, operand 0']
    #allocation4 [shape = 's32[2]{0}', space=sflag, size = 0x8, scoped, tag = 'scoped memory for downsample_block.1']
    %9 = vsyncpa [#allocation4], 0
    %s10 = scalar_lea.sflag [#allocation4], 1
    %11 = vsyncpa %s10, 0
    loop: start=0, step=1, limit=6
    $region2: #{downsample_block.1} parent=1 // loop_pre_header
      _
    $region3: #{downsample_block.1} parent=1 // loop_header
      %s13 = sphi 0, %s17
      %p14 = scmp.ge.s32.totalorder %s13, 6
      %s20 = sphi 0, %s32
      %s21 = sphi 0, %s28
      %s22 = sphi 0, %s20
      %s23 = sphi 0, %s21
      %s24 = sphi 0, %s22
      %s25 = sphi 0, %s23
      %s37 = sphi 0, %s39
      %s40 = sphi 0, %s37
      %s41 = sphi 0, %s40
      %s57 = sphi 0, %s41
      %s69 = sphi 0, %s71
      %s72 = sphi 0, %s69
      %s73 = sphi 0, %s72
      %s89 = sphi 0, %s73
      %s93 = sphi 0, %s93
      %s95 = sphi 0, %s93
      %s96 = sphi 0, %s95
      %s110 = sphi 0, %s96
      %s114 = sphi 0, %s114
      %s116 = sphi 0, %s114
      %s117 = sphi 0, %s116
      %s131 = sphi 0, %s117
      %s139 = sphi 0, %s141
      %s142 = sphi 0, %s139
      %s143 = sphi 0, %s142
      %s159 = sphi 0, %s143
    $region4: #{downsample_block.1} parent=1 // loop_header_branch
      %16 = sbr.rel (%p14) target = $region8
    $region5: #{downsample_block.1} parent=1 // loop_body
      %s18 = ssub.s32 %s13, 1
      %s19 = ssub.s32 %s13, 2
      %s26 = sadd.s32 1, %s21
      %p27 = scmp.ge.s32.totalorder %s26, 2
      %s28 = scalar_select %p27, 0, %s26
      %s29 = sadd.s32 1, %s20
      %s30 = scalar_select %p27, %s29, %s20
      %p31 = scmp.ge.s32.totalorder %s30, 2
      %s32 = scalar_select %p31, 0, %s30
      %s33 = ssub.s32 %s20, %s32
      %s34 = ssub.s32 %s21, %s28
      %s35 = sor.u32 %s33, %s34
      %p36 = scmp.eq.s32.totalorder %s35, 0
      %s38 = sadd.s32 %s37, 1
      %s39 = scalar_select %p36, %s37, %s38
      %p42 = pneg %p36
      %p43 = scmp.eq.s32.totalorder %s13, 3
      %p44 = por %p42, %p43
      %p45 = scmp.ne.s32.totalorder %s37, %s40
      %p46 = scmp.eq.s32.totalorder %s13, 0
      %p47 = por %p45, %p46
      %p48 = scmp.ne.s32.totalorder %s37, %s40
      %p49 = scmp.eq.s32.totalorder %s18, 3
      %p50 = por %p48, %p49
      %p51 = scmp.ne.s32.totalorder %s40, %s41
      %p52 = scmp.eq.s32.totalorder %s18, 0
      %p53 = por %p51, %p52
      %p54 = scmp.ne.s32.totalorder %s40, %s41
      %p55 = scmp.eq.s32.totalorder %s19, 3
      %p56 = por %p54, %p55
      %p58 = scmp.ne.s32.totalorder %s41, %s57
      %p59 = scmp.eq.s32.totalorder %s19, 0
      %p60 = por %p58, %p59
      %s61 = sadd.s32 %s21, 1
      %s62 = smul.u32 %s61, 4
      %s63 = sadd.s32 %s28, 1
      %s64 = smul.u32 %s63, 4
      %s65 = ssub.s32 %s20, %s32
      %s66 = ssub.s32 %s62, %s64
      %s67 = sor.u32 %s65, %s66
      %p68 = scmp.eq.s32.totalorder %s67, 0
      %s70 = sadd.s32 %s69, 1
      %s71 = scalar_select %p68, %s69, %s70
      %p74 = pneg %p68
      %p75 = scmp.eq.s32.totalorder %s13, 3
      %p76 = por %p74, %p75
      %p77 = scmp.ne.s32.totalorder %s69, %s72
      %p78 = scmp.eq.s32.totalorder %s13, 0
      %p79 = por %p77, %p78
      %p80 = scmp.ne.s32.totalorder %s69, %s72
      %p81 = scmp.eq.s32.totalorder %s18, 3
      %p82 = por %p80, %p81
      %p83 = scmp.ne.s32.totalorder %s72, %s73
      %p84 = scmp.eq.s32.totalorder %s18, 0
      %p85 = por %p83, %p84
      %p86 = scmp.ne.s32.totalorder %s72, %s73
      %p87 = scmp.eq.s32.totalorder %s19, 3
      %p88 = por %p86, %p87
      %p90 = scmp.ne.s32.totalorder %s73, %s89
      %p91 = scmp.eq.s32.totalorder %s19, 0
      %p92 = por %p90, %p91
      %s94 = sadd.s32 %s93, 1
      %p97 = scmp.eq.s32.totalorder %s13, 3
      %p98 = scmp.ne.s32.totalorder %s93, %s95
      %p99 = scmp.eq.s32.totalorder %s13, 0
      %p100 = por %p98, %p99
      %p101 = scmp.ne.s32.totalorder %s93, %s95
      %p102 = scmp.eq.s32.totalorder %s18, 3
      %p103 = por %p101, %p102
      %p104 = scmp.ne.s32.totalorder %s95, %s96
      %p105 = scmp.eq.s32.totalorder %s18, 0
      %p106 = por %p104, %p105
      %p107 = scmp.ne.s32.totalorder %s95, %s96
      %p108 = scmp.eq.s32.totalorder %s19, 3
      %p109 = por %p107, %p108
      %p111 = scmp.ne.s32.totalorder %s96, %s110
      %p112 = scmp.eq.s32.totalorder %s19, 0
      %p113 = por %p111, %p112
      %s115 = sadd.s32 %s114, 1
      %p118 = scmp.eq.s32.totalorder %s13, 3
      %p119 = scmp.ne.s32.totalorder %s114, %s116
      %p120 = scmp.eq.s32.totalorder %s13, 0
      %p121 = por %p119, %p120
      %p122 = scmp.ne.s32.totalorder %s114, %s116
      %p123 = scmp.eq.s32.totalorder %s18, 3
      %p124 = por %p122, %p123
      %p125 = scmp.ne.s32.totalorder %s116, %s117
      %p126 = scmp.eq.s32.totalorder %s18, 0
      %p127 = por %p125, %p126
      %p128 = scmp.ne.s32.totalorder %s116, %s117
      %p129 = scmp.eq.s32.totalorder %s19, 3
      %p130 = por %p128, %p129
      %p132 = scmp.ne.s32.totalorder %s117, %s131
      %p133 = scmp.eq.s32.totalorder %s19, 0
      %p134 = por %p132, %p133
      %s135 = ssub.s32 %s20, %s32
      %s136 = ssub.s32 %s21, %s28
      %s137 = sor.u32 %s135, %s136
      %p138 = scmp.eq.s32.totalorder %s137, 0
      %s140 = sadd.s32 %s139, 1
      %s141 = scalar_select %p138, %s139, %s140
      %p144 = pneg %p138
      %p145 = scmp.eq.s32.totalorder %s13, 3
      %p146 = por %p144, %p145
      %p147 = scmp.ne.s32.totalorder %s139, %s142
      %p148 = scmp.eq.s32.totalorder %s13, 0
      %p149 = por %p147, %p148
      %p150 = scmp.ne.s32.totalorder %s139, %s142
      %p151 = scmp.eq.s32.totalorder %s18, 3
      %p152 = por %p150, %p151
      %p153 = scmp.ne.s32.totalorder %s142, %s143
      %p154 = scmp.eq.s32.totalorder %s18, 0
      %p155 = por %p153, %p154
      %p156 = scmp.ne.s32.totalorder %s142, %s143
      %p157 = scmp.eq.s32.totalorder %s19, 3
      %p158 = por %p156, %p157
      %p160 = scmp.ne.s32.totalorder %s143, %s159
      %p161 = scmp.eq.s32.totalorder %s19, 0
      %p162 = por %p160, %p161
      %p163 = scmp.le.s32.totalorder 1, %s13
      %p164 = scmp.lt.s32.totalorder %s13, 5
      %p165 = pnand %p163, %p164
      %p166 = pneg %p165
      // Predicated region
      $region9: #{downsample_block.1} parent=5 // pred_check
        _
      $region10: #{downsample_block.1} parent=5 // pred_check_branch
        %168 = sbr.rel (%p165) target = $region12
      $region11: #{downsample_block.1} parent=5 // pred_region
        %s169 = ssub.s32 %s13, 1
        // Predicated region
        $region13: #{downsample_block.1} parent=11 // pred_check
          %p170 = pneg %p106
        $region14: #{downsample_block.1} parent=11 // pred_check_branch
          %172 = sbr.rel (%p170) target = $region16
        $region15: #{downsample_block.1} parent=11 // pred_region
          _
        $region16: #{downsample_block.1} parent=11 // pred_fallthru
          _
        // Predicated region
        $region17: #{downsample_block.1} parent=11 // pred_check
          %p173 = pneg %p127
        $region18: #{downsample_block.1} parent=11 // pred_check_branch
          %175 = sbr.rel (%p173) target = $region20
        $region19: #{downsample_block.1} parent=11 // pred_region
          _
        $region20: #{downsample_block.1} parent=11 // pred_fallthru
          _
      $region12: #{downsample_block.1} parent=5 // pred_fallthru
        _
      %p176 = scmp.lt.s32.totalorder %s13, 4
      // Predicated region
      $region21: #{downsample_block.1} parent=5 // pred_check
        %p177 = pneg %p176
      $region22: #{downsample_block.1} parent=5 // pred_check_branch
        %179 = sbr.rel (%p177) target = $region24
      $region23: #{downsample_block.1} parent=5 // pred_region
        // Predicated region
        $region25: #{downsample_block.1} parent=23 // pred_check
          %p180 = pneg %p47
        $region26: #{downsample_block.1} parent=23 // pred_check_branch
          %182 = sbr.rel (%p180) target = $region28
        $region27: #{downsample_block.1} parent=23 // pred_region
          %s183 = smul.u32 4, %s21
          %s184 = ssub.s32 9, %s183
          %p185 = scmp.lt.s32.totalorder %s184, 4
          %s186 = scalar_select %p185, %s184, 4
          %s187 = smul.u32 64, %s186
          %s188 = smul.u32 %s187, 2
          %s189 = smul.u32 %s188, 4
          %p190 = scmp.lt.s32.totalorder %s20, 1
          %s191 = scalar_select %p190, %s20, 1
          %p192 = scmp.lt.s32.totalorder %s183, 8
          %s193 = scalar_select %p192, %s183, 8
          %s194 = smul.addr %s193, 8
          %s195 = smul.addr %s191, 72
          %s196 = sadd.s32 %s194, %s195
          %s197 = smul.addr %s196, 4
          %s198 = scalar_lea.vmem %s0, %s197
          %s199 = smul.u32 4, %s21
          %s200 = ssub.s32 9, %s199
          %p201 = scmp.lt.s32.totalorder %s200, 4
          %s202 = scalar_select %p201, %s200, 4
          %s203 = smul.u32 64, %s202
          %s204 = smul.u32 %s203, 2
          %s205 = smul.u32 %s204, 4
        $region28: #{downsample_block.1} parent=23 // pred_fallthru
          _
        // Predicated region
        $region29: #{downsample_block.1} parent=23 // pred_check
          %p206 = pneg %p79
        $region30: #{downsample_block.1} parent=23 // pred_check_branch
          %208 = sbr.rel (%p206) target = $region32
        $region31: #{downsample_block.1} parent=23 // pred_region
          %s209 = sadd.s32 %s21, 1
          %s210 = smul.u32 %s209, 4
          %p211 = scmp.lt.s32.totalorder %s20, 1
          %s212 = scalar_select %p211, %s20, 1
          %p213 = scmp.lt.s32.totalorder %s210, 8
          %s214 = scalar_select %p213, %s210, 8
          %s215 = smul.addr %s214, 8
          %s216 = smul.addr %s212, 72
          %s217 = sadd.s32 %s215, %s216
          %s218 = smul.addr %s217, 4
          %s219 = scalar_lea.vmem %s1, %s218
          %s220 = sadd.s32 %s21, 1
          %s221 = smul.u32 %s220, 4
        $region32: #{downsample_block.1} parent=23 // pred_fallthru
          _
      $region24: #{downsample_block.1} parent=5 // pred_fallthru
        _
      %p222 = scmp.le.s32.totalorder 1, %s13
      %p223 = scmp.lt.s32.totalorder %s13, 5
      %p224 = pnand %p222, %p223
      %p225 = pneg %p224
      // Predicated region
      $region33: #{downsample_block.1} parent=5 // pred_check
        _
      $region34: #{downsample_block.1} parent=5 // pred_check_branch
        %227 = sbr.rel (%p224) target = $region36
      $region35: #{downsample_block.1} parent=5 // pred_region
        %s228 = ssub.s32 %s13, 1
        %s229 = smul.u32 4, %s23
        %s230 = ssub.s32 9, %s229
        %p231 = scmp.lt.s32.totalorder %s230, 4
        %s232 = scalar_select %p231, %s230, 4
        %s233 = smul.u32 64, %s232
        %s234 = smul.u32 %s233, 2
        %s235 = smul.u32 %s234, 4
        %p236 = scmp.lt.s32.totalorder %s22, 1
        %s237 = scalar_select %p236, %s22, 1
        %p238 = scmp.lt.s32.totalorder %s229, 8
        %s239 = scalar_select %p238, %s229, 8
        %s240 = smul.addr %s239, 8
        %s241 = smul.addr %s237, 72
        %s242 = sadd.s32 %s240, %s241
        %s243 = smul.addr %s242, 4
        %s244 = scalar_lea.vmem %s0, %s243
        %p245 = pneg %p53
        %p246 = pneg %p50
        %s247 = sadd.s32 %s23, 1
        %s248 = smul.u32 %s247, 4
        %p249 = scmp.lt.s32.totalorder %s22, 1
        %s250 = scalar_select %p249, %s22, 1
        %p251 = scmp.lt.s32.totalorder %s248, 8
        %s252 = scalar_select %p251, %s248, 8
        %s253 = smul.addr %s252, 8
        %s254 = smul.addr %s250, 72
        %s255 = sadd.s32 %s253, %s254
        %s256 = smul.addr %s255, 4
        %s257 = scalar_lea.vmem %s1, %s256
        %p258 = pneg %p85
        %p259 = pneg %p82
        %p260 = pneg %p106
        %p261 = pneg %p103
        %p262 = pneg %p127
        %p263 = pneg %p124
        %p264 = pneg %p155
        %p265 = pneg %p152
        %s266 = sand.u32 %s142, 1
        %s267 = scalar_lea.sflag [#allocation4], %s266
        %s268 = sand.u32 %s142, 1
        %s269 = smul.addr %s268, 32
        %s270 = scalar_lea.vmem [#allocation3], %s269
        %s271 = smul.u32 4, %s23
        %s272 = ssub.s32 9, %s271
        %p273 = scmp.lt.s32.totalorder %s272, 4
        %s274 = scalar_select %p273, %s272, 4
        %s275 = smul.u32 64, %s274
        %s276 = smul.u32 %s275, 2
        %s277 = smul.u32 %s276, 4
        %p278 = scmp.lt.s32.totalorder %s22, 1
        %s279 = scalar_select %p278, %s22, 1
        %p280 = scmp.lt.s32.totalorder %s271, 8
        %s281 = scalar_select %p280, %s271, 8
        %s282 = smul.addr %s281, 8
        %s283 = smul.addr %s279, 72
        %s284 = sadd.s32 %s282, %s283
        %s285 = smul.addr %s284, 4
        %s286 = scalar_lea.vmem %s0, %s285
        %s287 = smul.u32 4, %s23
        %s288 = ssub.s32 9, %s287
        %p289 = scmp.lt.s32.totalorder %s288, 4
        %s290 = scalar_select %p289, %s288, 4
        %s291 = smul.u32 64, %s290
        %s292 = smul.u32 %s291, 2
        %s293 = smul.u32 %s292, 4
        %s294 = sadd.s32 %s23, 1
        %s295 = smul.u32 %s294, 4
        %p296 = scmp.lt.s32.totalorder %s22, 1
        %s297 = scalar_select %p296, %s22, 1
        %p298 = scmp.lt.s32.totalorder %s295, 8
        %s299 = scalar_select %p298, %s295, 8
        %s300 = smul.addr %s299, 8
        %s301 = smul.addr %s297, 72
        %s302 = sadd.s32 %s300, %s301
        %s303 = smul.addr %s302, 4
        %s304 = scalar_lea.vmem %s1, %s303
        %s305 = sadd.s32 %s23, 1
        %s306 = smul.u32 %s305, 4
        %s307 = smul.u32 4, %s23
        %v309 = vld [vmem:[%s286] sm:$0xff]
        %v310 = vld [vmem:[%s286 + $0x8] sm:$0xff]
        %v311 = vld [vmem:[%s286 + $0x10] sm:$0x11]
        %v312 = vld [vmem:[%s286 + $0x18] sm:$0x11]
        %v313 = vld [vmem:[%s286 + $0x20] sm:$0xff]
        %v314 = vld [vmem:[%s286 + $0x28] sm:$0xff]
        %v315 = vld [vmem:[%s286 + $0x30] sm:$0x11]
        %v316 = vld [vmem:[%s286 + $0x38] sm:$0x11]
        %v317 = vld [vmem:[%s286 + $0x40] sm:$0xff]
        %v318 = vld [vmem:[%s286 + $0x48] sm:$0xff]
        %v319 = vld [vmem:[%s286 + $0x50] sm:$0x11]
        %v320 = vld [vmem:[%s286 + $0x58] sm:$0x11]
        %v321 = vld [vmem:[%s286 + $0x60] sm:$0xff]
        %v322 = vld [vmem:[%s286 + $0x68] sm:$0xff]
        %v323 = vld [vmem:[%s286 + $0x70] sm:$0x11]
        %v324 = vld [vmem:[%s286 + $0x78] sm:$0x11]
        %v325 = vld [vmem:[%s304] sm:$0xff]
        %v326 = vld [vmem:[%s304 + $0x10] sm:$0x11]
        %327 = vst [vmem:[#allocation2] sm:$0xff] %v309
        %328 = vst [vmem:[#allocation2 + $0x8] sm:$0xff] %v310
        %329 = vst [vmem:[#allocation2 + $0x24] sm:$0xff] %v313
        %330 = vst [vmem:[#allocation2 + $0x2c] sm:$0xff] %v314
        %331 = vst [vmem:[#allocation2 + $0x48] sm:$0xff] %v317
        %332 = vst [vmem:[#allocation2 + $0x50] sm:$0xff] %v318
        %333 = vst [vmem:[#allocation2 + $0x6c] sm:$0xff] %v321
        %334 = vst [vmem:[#allocation2 + $0x74] sm:$0xff] %v322
        %vm335 = vsmask.f32 3328
        %vm336 = vsmask.f32 7440
        %vm337 = vmor %vm335, %vm336
        %v339 = vshrl.u32 %v309, 16
        %v341 = vrot.slane %v339, 4
        %v342 = vshll.u32 %v309, 16
        %v344 = vrot.slane %v342, 5
        %v345 = vor.u32 %v341, %v344
        %v346 = vrot.slane %v345, 4
        %v348 = vshll.u32 %v311, 16
        %v350 = vrot.slane %v348, 5
        %v351 = vsel %vm337, %v346, %v350
        %v353 = vshrl.u32 %v313, 16
        %v355 = vrot.slane %v353, 4
        %v356 = vshll.u32 %v313, 16
        %v358 = vrot.slane %v356, 5
        %v359 = vor.u32 %v355, %v358
        %v360 = vrot.slane %v359, 4
        %v362 = vshll.u32 %v315, 16
        %v364 = vrot.slane %v362, 5
        %v365 = vsel %vm337, %v360, %v364
        %v367 = vshrl.u32 %v317, 16
        %v369 = vrot.slane %v367, 4
        %v370 = vshll.u32 %v317, 16
        %v372 = vrot.slane %v370, 5
        %v373 = vor.u32 %v369, %v372
        %v374 = vrot.slane %v373, 4
        %v376 = vshll.u32 %v319, 16
        %v378 = vrot.slane %v376, 5
        %v379 = vsel %vm337, %v374, %v378
        %v381 = vshrl.u32 %v321, 16
        %v383 = vrot.slane %v381, 4
        %v384 = vshll.u32 %v321, 16
        %v386 = vrot.slane %v384, 5
        %v387 = vor.u32 %v383, %v386
        %v388 = vrot.slane %v387, 4
        %v390 = vshll.u32 %v323, 16
        %v392 = vrot.slane %v390, 5
        %v393 = vsel %vm337, %v388, %v392
        %398 = vst [vmem:[#allocation2 + $0x10] sm:$0xf] %v351
        %399 = vst [vmem:[#allocation2 + $0x34] sm:$0xf] %v365
        %400 = vst [vmem:[#allocation2 + $0x58] sm:$0xf] %v379
        %401 = vst [vmem:[#allocation2 + $0x7c] sm:$0xf] %v393
        %v403 = vshrl.u32 %v310, 16
        %v405 = vrot.slane %v403, 4
        %v406 = vshll.u32 %v310, 16
        %v408 = vrot.slane %v406, 5
        %v409 = vor.u32 %v405, %v408
        %v410 = vrot.slane %v409, 4
        %v412 = vshll.u32 %v312, 16
        %v414 = vrot.slane %v412, 5
        %v415 = vsel %vm337, %v410, %v414
        %v417 = vshrl.u32 %v314, 16
        %v419 = vrot.slane %v417, 4
        %v420 = vshll.u32 %v314, 16
        %v422 = vrot.slane %v420, 5
        %v423 = vor.u32 %v419, %v422
        %v424 = vrot.slane %v423, 4
        %v426 = vshll.u32 %v316, 16
        %v428 = vrot.slane %v426, 5
        %v429 = vsel %vm337, %v424, %v428
        %v431 = vshrl.u32 %v318, 16
        %v433 = vrot.slane %v431, 4
        %v434 = vshll.u32 %v318, 16
        %v436 = vrot.slane %v434, 5
        %v437 = vor.u32 %v433, %v436
        %v438 = vrot.slane %v437, 4
        %v440 = vshll.u32 %v320, 16
        %v442 = vrot.slane %v440, 5
        %v443 = vsel %vm337, %v438, %v442
        %v445 = vshrl.u32 %v322, 16
        %v447 = vrot.slane %v445, 4
        %v448 = vshll.u32 %v322, 16
        %v450 = vrot.slane %v448, 5
        %v451 = vor.u32 %v447, %v450
        %v452 = vrot.slane %v451, 4
        %v454 = vshll.u32 %v324, 16
        %v456 = vrot.slane %v454, 5
        %v457 = vsel %vm337, %v452, %v456
        %462 = vst [vmem:[#allocation2 + $0x14] sm:$0xf] %v415
        %463 = vst [vmem:[#allocation2 + $0x38] sm:$0xf] %v429
        %464 = vst [vmem:[#allocation2 + $0x5c] sm:$0xf] %v443
        %465 = vst [vmem:[#allocation2 + $0x80] sm:$0xf] %v457
        %466 = vst [vmem:[#allocation2 + $0x18] sm:$0xff] %v313
        %467 = vst [vmem:[#allocation2 + $0x3c] sm:$0xff] %v317
        %468 = vst [vmem:[#allocation2 + $0x60] sm:$0xff] %v321
        %469 = vst [vmem:[#allocation2 + $0x84] sm:$0xff] %v325
        %v471 = vshrl.u32 %v325, 16
        %v473 = vrot.slane %v471, 4
        %v474 = vshll.u32 %v325, 16
        %v476 = vrot.slane %v474, 5
        %v477 = vor.u32 %v473, %v476
        %v478 = vrot.slane %v477, 4
        %v480 = vshll.u32 %v326, 16
        %v482 = vrot.slane %v480, 5
        %v483 = vsel %vm337, %v478, %v482
        %485 = vst [vmem:[#allocation2 + $0x20] sm:$0xf] %v365
        %486 = vst [vmem:[#allocation2 + $0x44] sm:$0xf] %v379
        %487 = vst [vmem:[#allocation2 + $0x68] sm:$0xf] %v393
        %488 = vst [vmem:[#allocation2 + $0x8c] sm:$0xf] %v483
        %v489 = vld [vmem:[#allocation2] sm:$0xff]
        %v490 = vld [vmem:[#allocation2 + $0x8] sm:$0xff]
        %v491 = vld [vmem:[#allocation2 + $0x10] sm:$0xff]
        %v492 = vld [vmem:[#allocation2 + $0x18] sm:$0xff]
        %v493 = vld [vmem:[#allocation2 + $0x20] sm:$0xf]
        %v494 = vld [vmem:[#allocation2 + $0x24] sm:$0xff]
        %v495 = vld [vmem:[#allocation2 + $0x2c] sm:$0xff]
        %v496 = vld [vmem:[#allocation2 + $0x34] sm:$0xff]
        %v497 = vld [vmem:[#allocation2 + $0x3c] sm:$0xff]
        %v498 = vld [vmem:[#allocation2 + $0x44] sm:$0xf]
        %v499 = vld [vmem:[#allocation2 + $0x48] sm:$0xff]
        %v500 = vld [vmem:[#allocation2 + $0x50] sm:$0xff]
        %v501 = vld [vmem:[#allocation2 + $0x58] sm:$0xff]
        %v502 = vld [vmem:[#allocation2 + $0x60] sm:$0xff]
        %v503 = vld [vmem:[#allocation2 + $0x68] sm:$0xf]
        %v504 = vld [vmem:[#allocation2 + $0x6c] sm:$0xff]
        %v505 = vld [vmem:[#allocation2 + $0x74] sm:$0xff]
        %v506 = vld [vmem:[#allocation2 + $0x7c] sm:$0xff]
        %v507 = vld [vmem:[#allocation2 + $0x84] sm:$0xff]
        %v508 = vld [vmem:[#allocation2 + $0x8c] sm:$0xf]
        %v509 = vld [vmem:[%s2] sm:$0xf]
        %v510 = vld [vmem:[%s2 + $0x4] sm:$0xf]
        %v511 = vld [vmem:[%s2 + $0x8] sm:$0xf]
        %v512 = vld [vmem:[%s2 + $0xc] sm:$0xf]
        %v513 = vld [vmem:[%s2 + $0x10] sm:$0xf]
        %v514 = vld [vmem:[%s2 + $0x14] sm:$0xf]
        %v515 = vld [vmem:[%s2 + $0x18] sm:$0xf]
        %v516 = vld [vmem:[%s2 + $0x1c] sm:$0xf]
        %v517 = vld [vmem:[%s2 + $0x20] sm:$0xf]
        %v518 = vld [vmem:[%s2 + $0x24] sm:$0xf]
        %v519 = vld [vmem:[%s2 + $0x28] sm:$0xf]
        %v520 = vld [vmem:[%s2 + $0x2c] sm:$0xf]
        %v521 = vld [vmem:[%s2 + $0x30] sm:$0xf]
        %v522 = vld [vmem:[%s2 + $0x34] sm:$0xf]
        %v523 = vld [vmem:[%s2 + $0x38] sm:$0xf]
        %v524 = vld [vmem:[%s2 + $0x3c] sm:$0xf]
        %v525 = vld [vmem:[%s2 + $0x40] sm:$0xf]
        %v526 = vld [vmem:[%s2 + $0x44] sm:$0xf]
        %v527 = vld [vmem:[%s2 + $0x48] sm:$0xf]
        %v528 = vld [vmem:[%s2 + $0x4c] sm:$0xf]
        %v529 = vld [vmem:[%s2 + $0x50] sm:$0xf]
        %v530 = vld [vmem:[%s2 + $0x54] sm:$0xf]
        %v531 = vld [vmem:[%s2 + $0x58] sm:$0xf]
        %v532 = vld [vmem:[%s2 + $0x5c] sm:$0xf]
        %v533 = vld [vmem:[%s2 + $0x60] sm:$0xf]
        %v534 = vld [vmem:[%s2 + $0x64] sm:$0xf]
        %v535 = vld [vmem:[%s2 + $0x68] sm:$0xf]
        %v536 = vld [vmem:[%s2 + $0x6c] sm:$0xf]
        %v537 = vld [vmem:[%s2 + $0x70] sm:$0xf]
        %v538 = vld [vmem:[%s2 + $0x74] sm:$0xf]
        %v539 = vld [vmem:[%s2 + $0x78] sm:$0xf]
        %v540 = vld [vmem:[%s2 + $0x7c] sm:$0xf]
        %v541 = vld [vmem:[%s2 + $0x80] sm:$0xf]
        %v542 = vld [vmem:[%s2 + $0x84] sm:$0xf]
        %v543 = vld [vmem:[%s2 + $0x88] sm:$0xf]
        %v544 = vld [vmem:[%s2 + $0x8c] sm:$0xf]
        %v545 = vld [vmem:[%s2 + $0x90] sm:$0xf]
        %v546 = vld [vmem:[%s2 + $0x94] sm:$0xf]
        %v547 = vld [vmem:[%s2 + $0x98] sm:$0xf]
        %v548 = vld [vmem:[%s2 + $0x9c] sm:$0xf]
        %v549 = vld [vmem:[%s2 + $0xa0] sm:$0xf]
        %v550 = vld [vmem:[%s2 + $0xa4] sm:$0xf]
        %v551 = vld [vmem:[%s2 + $0xa8] sm:$0xf]
        %v552 = vld [vmem:[%s2 + $0xac] sm:$0xf]
        %v553 = vld [vmem:[%s2 + $0xb0] sm:$0xf]
        %v554 = vld [vmem:[%s2 + $0xb4] sm:$0xf]
        %v555 = vld [vmem:[%s2 + $0xb8] sm:$0xf]
        %v556 = vld [vmem:[%s2 + $0xbc] sm:$0xf]
        %v557 = vld [vmem:[%s2 + $0xc0] sm:$0xf]
        %v558 = vld [vmem:[%s2 + $0xc4] sm:$0xf]
        %v559 = vld [vmem:[%s2 + $0xc8] sm:$0xf]
        %v560 = vld [vmem:[%s2 + $0xcc] sm:$0xf]
        %v561 = vld [vmem:[%s2 + $0xd0] sm:$0xf]
        %v562 = vld [vmem:[%s2 + $0xd4] sm:$0xf]
        %v563 = vld [vmem:[%s2 + $0xd8] sm:$0xf]
        %v564 = vld [vmem:[%s2 + $0xdc] sm:$0xf]
        %v565 = vld [vmem:[%s2 + $0xe0] sm:$0xf]
        %v566 = vld [vmem:[%s2 + $0xe4] sm:$0xf]
        %v567 = vld [vmem:[%s2 + $0xe8] sm:$0xf]
        %v568 = vld [vmem:[%s2 + $0xec] sm:$0xf]
        %v569 = vld [vmem:[%s2 + $0xf0] sm:$0xf]
        %v570 = vld [vmem:[%s2 + $0xf4] sm:$0xf]
        %v571 = vld [vmem:[%s2 + $0xf8] sm:$0xf]
        %v572 = vld [vmem:[%s2 + $0xfc] sm:$0xf]
        %v573 = vld [vmem:[%s2 + $0x100] sm:$0xf]
        %v574 = vld [vmem:[%s2 + $0x104] sm:$0xf]
        %v575 = vld [vmem:[%s2 + $0x108] sm:$0xf]
        %v576 = vld [vmem:[%s2 + $0x10c] sm:$0xf]
        %v577 = vld [vmem:[%s2 + $0x110] sm:$0xf]
        %v578 = vld [vmem:[%s2 + $0x114] sm:$0xf]
        %v579 = vld [vmem:[%s2 + $0x118] sm:$0xf]
        %v580 = vld [vmem:[%s2 + $0x11c] sm:$0xf]
        %v581 = vld [vmem:[%s2 + $0x120] sm:$0xf]
        %v582 = vld [vmem:[%s2 + $0x124] sm:$0xf]
        %v583 = vld [vmem:[%s2 + $0x128] sm:$0xf]
        %v584 = vld [vmem:[%s2 + $0x12c] sm:$0xf]
        %v585 = vld [vmem:[%s2 + $0x130] sm:$0xf]
        %v586 = vld [vmem:[%s2 + $0x134] sm:$0xf]
        %v587 = vld [vmem:[%s2 + $0x138] sm:$0xf]
        %v588 = vld [vmem:[%s2 + $0x13c] sm:$0xf]
        %v589 = vld [vmem:[%s2 + $0x140] sm:$0xf]
        %v590 = vld [vmem:[%s2 + $0x144] sm:$0xf]
        %v591 = vld [vmem:[%s2 + $0x148] sm:$0xf]
        %v592 = vld [vmem:[%s2 + $0x14c] sm:$0xf]
        %v593 = vld [vmem:[%s2 + $0x150] sm:$0xf]
        %v594 = vld [vmem:[%s2 + $0x154] sm:$0xf]
        %v595 = vld [vmem:[%s2 + $0x158] sm:$0xf]
        %v596 = vld [vmem:[%s2 + $0x15c] sm:$0xf]
        %v597 = vld [vmem:[%s2 + $0x160] sm:$0xf]
        %v598 = vld [vmem:[%s2 + $0x164] sm:$0xf]
        %v599 = vld [vmem:[%s2 + $0x168] sm:$0xf]
        %v600 = vld [vmem:[%s2 + $0x16c] sm:$0xf]
        %v601 = vld [vmem:[%s2 + $0x170] sm:$0xf]
        %v602 = vld [vmem:[%s2 + $0x174] sm:$0xf]
        %v603 = vld [vmem:[%s2 + $0x178] sm:$0xf]
        %v604 = vld [vmem:[%s2 + $0x17c] sm:$0xf]
        %v605 = vld [vmem:[%s2 + $0x180] sm:$0xf]
        %v606 = vld [vmem:[%s2 + $0x184] sm:$0xf]
        %v607 = vld [vmem:[%s2 + $0x188] sm:$0xf]
        %v608 = vld [vmem:[%s2 + $0x18c] sm:$0xf]
        %v609 = vld [vmem:[%s2 + $0x190] sm:$0xf]
        %v610 = vld [vmem:[%s2 + $0x194] sm:$0xf]
        %v611 = vld [vmem:[%s2 + $0x198] sm:$0xf]
        %v612 = vld [vmem:[%s2 + $0x19c] sm:$0xf]
        %v613 = vld [vmem:[%s2 + $0x1a0] sm:$0xf]
        %v614 = vld [vmem:[%s2 + $0x1a4] sm:$0xf]
        %v615 = vld [vmem:[%s2 + $0x1a8] sm:$0xf]
        %v616 = vld [vmem:[%s2 + $0x1ac] sm:$0xf]
        %v617 = vld [vmem:[%s2 + $0x1b0] sm:$0xf]
        %v618 = vld [vmem:[%s2 + $0x1b4] sm:$0xf]
        %v619 = vld [vmem:[%s2 + $0x1b8] sm:$0xf]
        %v620 = vld [vmem:[%s2 + $0x1bc] sm:$0xf]
        %v621 = vld [vmem:[%s2 + $0x1c0] sm:$0xf]
        %v622 = vld [vmem:[%s2 + $0x1c4] sm:$0xf]
        %v623 = vld [vmem:[%s2 + $0x1c8] sm:$0xf]
        %v624 = vld [vmem:[%s2 + $0x1cc] sm:$0xf]
        %v625 = vld [vmem:[%s2 + $0x1d0] sm:$0xf]
        %v626 = vld [vmem:[%s2 + $0x1d4] sm:$0xf]
        %v627 = vld [vmem:[%s2 + $0x1d8] sm:$0xf]
        %v628 = vld [vmem:[%s2 + $0x1dc] sm:$0xf]
        %v629 = vld [vmem:[%s2 + $0x1e0] sm:$0xf]
        %v630 = vld [vmem:[%s2 + $0x1e4] sm:$0xf]
        %v631 = vld [vmem:[%s2 + $0x1e8] sm:$0xf]
        %v632 = vld [vmem:[%s2 + $0x1ec] sm:$0xf]
        %v633 = vld [vmem:[%s2 + $0x1f0] sm:$0xf]
        %v634 = vld [vmem:[%s2 + $0x1f4] sm:$0xf]
        %v635 = vld [vmem:[%s2 + $0x1f8] sm:$0xf]
        %v636 = vld [vmem:[%s2 + $0x1fc] sm:$0xf]
        %v637 = vld [vmem:[%s2 + $0x200] sm:$0xf]
        %v638 = vld [vmem:[%s2 + $0x204] sm:$0xf]
        %v639 = vld [vmem:[%s2 + $0x208] sm:$0xf]
        %v640 = vld [vmem:[%s2 + $0x20c] sm:$0xf]
        %v641 = vld [vmem:[%s2 + $0x210] sm:$0xf]
        %v642 = vld [vmem:[%s2 + $0x214] sm:$0xf]
        %v643 = vld [vmem:[%s2 + $0x218] sm:$0xf]
        %v644 = vld [vmem:[%s2 + $0x21c] sm:$0xf]
        %v645 = vld [vmem:[%s2 + $0x220] sm:$0xf]
        %v646 = vld [vmem:[%s2 + $0x224] sm:$0xf]
        %v647 = vld [vmem:[%s2 + $0x228] sm:$0xf]
        %v648 = vld [vmem:[%s2 + $0x22c] sm:$0xf]
        %v649 = vld [vmem:[%s2 + $0x230] sm:$0xf]
        %v650 = vld [vmem:[%s2 + $0x234] sm:$0xf]
        %v651 = vld [vmem:[%s2 + $0x238] sm:$0xf]
        %v652 = vld [vmem:[%s2 + $0x23c] sm:$0xf]
        %v653 = vld [vmem:[%s3] sm:$0x1]
        %v655 = vlaneseq
        %v656 = vshrl.u32 %v655, 7
        %v657 = vsub.s32 0, %v656
        %v658 = vrot.slane %v653, %v657
        %v680 = vunpack.c.l.b16 %v489
        %v681 = vunpack.c.h.b16 %v489
        %v682 = vunpack.c.l.b16 %v490
        %v683 = vunpack.c.h.b16 %v490
        %v684 = vunpack.c.l.b16 %v491
        %v685 = vunpack.c.h.b16 %v491
        %v686 = vunpack.c.l.b16 %v492
        %v687 = vunpack.c.h.b16 %v492
        %v688 = vunpack.c.l.b16 %v493
        %v689 = vunpack.c.l.b16 %v494
        %v690 = vunpack.c.h.b16 %v494
        %v691 = vunpack.c.l.b16 %v495
        %v692 = vunpack.c.h.b16 %v495
        %v693 = vunpack.c.l.b16 %v496
        %v694 = vunpack.c.h.b16 %v496
        %v695 = vunpack.c.l.b16 %v497
        %v696 = vunpack.c.h.b16 %v497
        %v697 = vunpack.c.l.b16 %v498
        %v698 = vunpack.c.l.b16 %v499
        %v699 = vunpack.c.h.b16 %v499
        %v700 = vunpack.c.l.b16 %v500
        %v701 = vunpack.c.h.b16 %v500
        %v702 = vunpack.c.l.b16 %v501
        %v703 = vunpack.c.h.b16 %v501
        %v704 = vunpack.c.l.b16 %v502
        %v705 = vunpack.c.h.b16 %v502
        %v706 = vunpack.c.l.b16 %v503
        %v707 = vunpack.c.l.b16 %v504
        %v708 = vunpack.c.h.b16 %v504
        %v709 = vunpack.c.l.b16 %v505
        %v710 = vunpack.c.h.b16 %v505
        %v711 = vunpack.c.l.b16 %v506
        %v712 = vunpack.c.h.b16 %v506
        %v713 = vunpack.c.l.b16 %v507
        %v714 = vunpack.c.h.b16 %v507
        %v715 = vunpack.c.l.b16 %v508
        %v716 = vpack.c.b16 %v689, %v680
        %v717 = vpack.c.b16 %v690, %v681
        %v718 = vpack.c.b16 %v691, %v682
        %v719 = vpack.c.b16 %v692, %v683
        %v720 = vpack.c.b16 %v693, %v684
        %v721 = vpack.c.b16 %v694, %v685
        %v722 = vpack.c.b16 %v695, %v686
        %v723 = vpack.c.b16 %v696, %v687
        %v724 = vpack.c.b16 %v697, %v688
        %v725 = vpack.c.b16 %v707, %v698
        %v726 = vpack.c.b16 %v708, %v699
        %v727 = vpack.c.b16 %v709, %v700
        %v728 = vpack.c.b16 %v710, %v701
        %v729 = vpack.c.b16 %v711, %v702
        %v730 = vpack.c.b16 %v712, %v703
        %v731 = vpack.c.b16 %v713, %v704
        %v732 = vpack.c.b16 %v714, %v705
        %v733 = vpack.c.b16 %v715, %v706
        %v896 = vunpack.c.l.b16 %v509
        %v897 = vunpack.c.l.b16 %v510
        %v898 = vunpack.c.l.b16 %v511
        %v899 = vunpack.c.l.b16 %v512
        %v900 = vunpack.c.l.b16 %v513
        %v901 = vunpack.c.l.b16 %v514
        %v902 = vunpack.c.l.b16 %v515
        %v903 = vunpack.c.l.b16 %v516
        %v904 = vunpack.c.l.b16 %v517
        %v905 = vunpack.c.l.b16 %v518
        %v906 = vunpack.c.l.b16 %v519
        %v907 = vunpack.c.l.b16 %v520
        %v908 = vunpack.c.l.b16 %v521
        %v909 = vunpack.c.l.b16 %v522
        %v910 = vunpack.c.l.b16 %v523
        %v911 = vunpack.c.l.b16 %v524
        %v912 = vunpack.c.l.b16 %v525
        %v913 = vunpack.c.l.b16 %v526
        %v914 = vunpack.c.l.b16 %v527
        %v915 = vunpack.c.l.b16 %v528
        %v916 = vunpack.c.l.b16 %v529
        %v917 = vunpack.c.l.b16 %v530
        %v918 = vunpack.c.l.b16 %v531
        %v919 = vunpack.c.l.b16 %v532
        %v920 = vunpack.c.l.b16 %v533
        %v921 = vunpack.c.l.b16 %v534
        %v922 = vunpack.c.l.b16 %v535
        %v923 = vunpack.c.l.b16 %v536
        %v924 = vunpack.c.l.b16 %v537
        %v925 = vunpack.c.l.b16 %v538
        %v926 = vunpack.c.l.b16 %v539
        %v927 = vunpack.c.l.b16 %v540
        %v928 = vunpack.c.l.b16 %v541
        %v929 = vunpack.c.l.b16 %v542
        %v930 = vunpack.c.l.b16 %v543
        %v931 = vunpack.c.l.b16 %v544
        %v932 = vunpack.c.l.b16 %v545
        %v933 = vunpack.c.l.b16 %v546
        %v934 = vunpack.c.l.b16 %v547
        %v935 = vunpack.c.l.b16 %v548
        %v936 = vunpack.c.l.b16 %v549
        %v937 = vunpack.c.l.b16 %v550
        %v938 = vunpack.c.l.b16 %v551
        %v939 = vunpack.c.l.b16 %v552
        %v940 = vunpack.c.l.b16 %v553
        %v941 = vunpack.c.l.b16 %v554
        %v942 = vunpack.c.l.b16 %v555
        %v943 = vunpack.c.l.b16 %v556
        %v944 = vunpack.c.l.b16 %v557
        %v945 = vunpack.c.l.b16 %v558
        %v946 = vunpack.c.l.b16 %v559
        %v947 = vunpack.c.l.b16 %v560
        %v948 = vunpack.c.l.b16 %v561
        %v949 = vunpack.c.l.b16 %v562
        %v950 = vunpack.c.l.b16 %v563
        %v951 = vunpack.c.l.b16 %v564
        %v952 = vunpack.c.l.b16 %v565
        %v953 = vunpack.c.l.b16 %v566
        %v954 = vunpack.c.l.b16 %v567
        %v955 = vunpack.c.l.b16 %v568
        %v956 = vunpack.c.l.b16 %v569
        %v957 = vunpack.c.l.b16 %v570
        %v958 = vunpack.c.l.b16 %v571
        %v959 = vunpack.c.l.b16 %v572
        %v960 = vunpack.c.l.b16 %v573
        %v961 = vunpack.c.l.b16 %v574
        %v962 = vunpack.c.l.b16 %v575
        %v963 = vunpack.c.l.b16 %v576
        %v964 = vunpack.c.l.b16 %v577
        %v965 = vunpack.c.l.b16 %v578
        %v966 = vunpack.c.l.b16 %v579
        %v967 = vunpack.c.l.b16 %v580
        %v968 = vunpack.c.l.b16 %v581
        %v969 = vunpack.c.l.b16 %v582
        %v970 = vunpack.c.l.b16 %v583
        %v971 = vunpack.c.l.b16 %v584
        %v972 = vunpack.c.l.b16 %v585
        %v973 = vunpack.c.l.b16 %v586
        %v974 = vunpack.c.l.b16 %v587
        %v975 = vunpack.c.l.b16 %v588
        %v976 = vunpack.c.l.b16 %v589
        %v977 = vunpack.c.l.b16 %v590
        %v978 = vunpack.c.l.b16 %v591
        %v979 = vunpack.c.l.b16 %v592
        %v980 = vunpack.c.l.b16 %v593
        %v981 = vunpack.c.l.b16 %v594
        %v982 = vunpack.c.l.b16 %v595
        %v983 = vunpack.c.l.b16 %v596
        %v984 = vunpack.c.l.b16 %v597
        %v985 = vunpack.c.l.b16 %v598
        %v986 = vunpack.c.l.b16 %v599
        %v987 = vunpack.c.l.b16 %v600
        %v988 = vunpack.c.l.b16 %v601
        %v989 = vunpack.c.l.b16 %v602
        %v990 = vunpack.c.l.b16 %v603
        %v991 = vunpack.c.l.b16 %v604
        %v992 = vunpack.c.l.b16 %v605
        %v993 = vunpack.c.l.b16 %v606
        %v994 = vunpack.c.l.b16 %v607
        %v995 = vunpack.c.l.b16 %v608
        %v996 = vunpack.c.l.b16 %v609
        %v997 = vunpack.c.l.b16 %v610
        %v998 = vunpack.c.l.b16 %v611
        %v999 = vunpack.c.l.b16 %v612
        %v1000 = vunpack.c.l.b16 %v613
        %v1001 = vunpack.c.l.b16 %v614
        %v1002 = vunpack.c.l.b16 %v615
        %v1003 = vunpack.c.l.b16 %v616
        %v1004 = vunpack.c.l.b16 %v617
        %v1005 = vunpack.c.l.b16 %v618
        %v1006 = vunpack.c.l.b16 %v619
        %v1007 = vunpack.c.l.b16 %v620
        %v1008 = vunpack.c.l.b16 %v621
        %v1009 = vunpack.c.l.b16 %v622
        %v1010 = vunpack.c.l.b16 %v623
        %v1011 = vunpack.c.l.b16 %v624
        %v1012 = vunpack.c.l.b16 %v625
        %v1013 = vunpack.c.l.b16 %v626
        %v1014 = vunpack.c.l.b16 %v627
        %v1015 = vunpack.c.l.b16 %v628
        %v1016 = vunpack.c.l.b16 %v629
        %v1017 = vunpack.c.l.b16 %v630
        %v1018 = vunpack.c.l.b16 %v631
        %v1019 = vunpack.c.l.b16 %v632
        %v1020 = vunpack.c.l.b16 %v633
        %v1021 = vunpack.c.l.b16 %v634
        %v1022 = vunpack.c.l.b16 %v635
        %v1023 = vunpack.c.l.b16 %v636
        %v1024 = vunpack.c.l.b16 %v637
        %v1025 = vunpack.c.l.b16 %v638
        %v1026 = vunpack.c.l.b16 %v639
        %v1027 = vunpack.c.l.b16 %v640
        %v1028 = vunpack.c.l.b16 %v641
        %v1029 = vunpack.c.l.b16 %v642
        %v1030 = vunpack.c.l.b16 %v643
        %v1031 = vunpack.c.l.b16 %v644
        %v1032 = vunpack.c.l.b16 %v645
        %v1033 = vunpack.c.l.b16 %v646
        %v1034 = vunpack.c.l.b16 %v647
        %v1035 = vunpack.c.l.b16 %v648
        %v1036 = vunpack.c.l.b16 %v649
        %v1037 = vunpack.c.l.b16 %v650
        %v1038 = vunpack.c.l.b16 %v651
        %v1039 = vunpack.c.l.b16 %v652
        %v1040 = vpack.c.b16 %v897, %v896
        %v1041 = vpack.c.b16 %v899, %v898
        %v1042 = vpack.c.b16 %v901, %v900
        %v1043 = vpack.c.b16 %v903, %v902
        %v1044 = vpack.c.b16 %v905, %v904
        %v1045 = vpack.c.b16 %v907, %v906
        %v1046 = vpack.c.b16 %v909, %v908
        %v1047 = vpack.c.b16 %v911, %v910
        %v1048 = vpack.c.b16 %v913, %v912
        %v1049 = vpack.c.b16 %v915, %v914
        %v1050 = vpack.c.b16 %v917, %v916
        %v1051 = vpack.c.b16 %v919, %v918
        %v1052 = vpack.c.b16 %v921, %v920
        %v1053 = vpack.c.b16 %v923, %v922
        %v1054 = vpack.c.b16 %v925, %v924
        %v1055 = vpack.c.b16 %v927, %v926
        %v1056 = vpack.c.b16 %v929, %v928
        %v1057 = vpack.c.b16 %v931, %v930
        %v1058 = vpack.c.b16 %v933, %v932
        %v1059 = vpack.c.b16 %v935, %v934
        %v1060 = vpack.c.b16 %v937, %v936
        %v1061 = vpack.c.b16 %v939, %v938
        %v1062 = vpack.c.b16 %v941, %v940
        %v1063 = vpack.c.b16 %v943, %v942
        %v1064 = vpack.c.b16 %v945, %v944
        %v1065 = vpack.c.b16 %v947, %v946
        %v1066 = vpack.c.b16 %v949, %v948
        %v1067 = vpack.c.b16 %v951, %v950
        %v1068 = vpack.c.b16 %v953, %v952
        %v1069 = vpack.c.b16 %v955, %v954
        %v1070 = vpack.c.b16 %v957, %v956
        %v1071 = vpack.c.b16 %v959, %v958
        %v1072 = vpack.c.b16 %v961, %v960
        %v1073 = vpack.c.b16 %v963, %v962
        %v1074 = vpack.c.b16 %v965, %v964
        %v1075 = vpack.c.b16 %v967, %v966
        %v1076 = vpack.c.b16 %v969, %v968
        %v1077 = vpack.c.b16 %v971, %v970
        %v1078 = vpack.c.b16 %v973, %v972
        %v1079 = vpack.c.b16 %v975, %v974
        %v1080 = vpack.c.b16 %v977, %v976
        %v1081 = vpack.c.b16 %v979, %v978
        %v1082 = vpack.c.b16 %v981, %v980
        %v1083 = vpack.c.b16 %v983, %v982
        %v1084 = vpack.c.b16 %v985, %v984
        %v1085 = vpack.c.b16 %v987, %v986
        %v1086 = vpack.c.b16 %v989, %v988
        %v1087 = vpack.c.b16 %v991, %v990
        %v1088 = vpack.c.b16 %v993, %v992
        %v1089 = vpack.c.b16 %v995, %v994
        %v1090 = vpack.c.b16 %v997, %v996
        %v1091 = vpack.c.b16 %v999, %v998
        %v1092 = vpack.c.b16 %v1001, %v1000
        %v1093 = vpack.c.b16 %v1003, %v1002
        %v1094 = vpack.c.b16 %v1005, %v1004
        %v1095 = vpack.c.b16 %v1007, %v1006
        %v1096 = vpack.c.b16 %v1009, %v1008
        %v1097 = vpack.c.b16 %v1011, %v1010
        %v1098 = vpack.c.b16 %v1013, %v1012
        %v1099 = vpack.c.b16 %v1015, %v1014
        %v1100 = vpack.c.b16 %v1017, %v1016
        %v1101 = vpack.c.b16 %v1019, %v1018
        %v1102 = vpack.c.b16 %v1021, %v1020
        %v1103 = vpack.c.b16 %v1023, %v1022
        %v1104 = vpack.c.b16 %v1025, %v1024
        %v1105 = vpack.c.b16 %v1027, %v1026
        %v1106 = vpack.c.b16 %v1029, %v1028
        %v1107 = vpack.c.b16 %v1031, %v1030
        %v1108 = vpack.c.b16 %v1033, %v1032
        %v1109 = vpack.c.b16 %v1035, %v1034
        %v1110 = vpack.c.b16 %v1037, %v1036
        %v1111 = vpack.c.b16 %v1039, %v1038
        %1184 = vmatprep.subr.bf16.mxu0 0
        %1185 = vmatpush1.bf16.msra.mxu0 %v1047
        %1186 = vmatprep.subr.bf16.mxu0 0
        %1187 = vmatpush1.bf16.msra.mxu0 %v1046
        %1188 = vmatprep.subr.bf16.mxu0 0
        %1189 = vmatpush1.bf16.msra.mxu0 %v1045
        %1190 = vmatprep.subr.bf16.mxu0 0
        %1191 = vmatpush1.bf16.msra.mxu0 %v1044
        %1192 = vmatprep.subr.bf16.mxu0 0
        %1193 = vmatpush1.bf16.msra.mxu0 %v1043
        %1194 = vmatprep.subr.bf16.mxu0 0
        %1195 = vmatpush1.bf16.msra.mxu0 %v1042
        %1196 = vmatprep.subr.bf16.mxu0 0
        %1197 = vmatpush1.bf16.msra.mxu0 %v1041
        %1198 = vmatprep.subr.bf16.mxu0 0
        %1199 = vmatpush1.bf16.msra.mxu0 %v1040
        %1200 = vmatprep.subr.bf16.mxu0 0
        %1201 = vmatpush2.bf16.msra.mxu0 %v1055
        %1202 = vmatprep.subr.bf16.mxu0 0
        %1203 = vmatpush2.bf16.msra.mxu0 %v1054
        %1204 = vmatprep.subr.bf16.mxu0 0
        %1205 = vmatpush2.bf16.msra.mxu0 %v1053
        %1206 = vmatprep.subr.bf16.mxu0 0
        %1207 = vmatpush2.bf16.msra.mxu0 %v1052
        %1208 = vmatprep.subr.bf16.mxu0 0
        %1209 = vmatpush2.bf16.msra.mxu0 %v1051
        %1210 = vmatprep.subr.bf16.mxu0 0
        %1211 = vmatpush2.bf16.msra.mxu0 %v1050
        %1212 = vmatprep.subr.bf16.mxu0 0
        %1213 = vmatpush2.bf16.msra.mxu0 %v1049
        %1214 = vmatprep.subr.bf16.mxu0 0
        %1215 = vmatpush2.bf16.msra.mxu0 %v1048
        %1216 = vmatprep.mubr.bf16.mxu0 %v717
        %1217 = vmatmul.mubr.bf16.gmra.mxu0 %v716
        %v1218 = vpop.f32.mrf.mxu0
        %v1219 = vadd.f32 %v658, %v1218
        %v1220 = vpop.f32.mrf.mxu0
        %v1221 = vpop.f32.mrf.mxu0
        %v1222 = vadd.f32 %v658, %v1221
        %v1223 = vpop.f32.mrf.mxu0
        %1224 = vmatprep.mubr.bf16.mxu0 %v726
        %1225 = vmatmul.mubr.bf16.gmra.mxu0 %v725
        %v1226 = vpop.f32.mrf.mxu0
        %v1227 = vadd.f32 %v658, %v1226
        %v1228 = vpop.f32.mrf.mxu0
        %v1229 = vpop.f32.mrf.mxu0
        %v1230 = vadd.f32 %v658, %v1229
        %v1231 = vpop.f32.mrf.mxu0
        %1232 = vdwg.mxu0
        %1233 = vmatprep.subr.bf16.mxu0 0
        %1234 = vmatpush1.bf16.msra.mxu0 %v1063
        %1235 = vmatprep.subr.bf16.mxu0 0
        %1236 = vmatpush1.bf16.msra.mxu0 %v1062
        %1237 = vmatprep.subr.bf16.mxu0 0
        %1238 = vmatpush1.bf16.msra.mxu0 %v1061
        %1239 = vmatprep.subr.bf16.mxu0 0
        %1240 = vmatpush1.bf16.msra.mxu0 %v1060
        %1241 = vmatprep.subr.bf16.mxu0 0
        %1242 = vmatpush1.bf16.msra.mxu0 %v1059
        %1243 = vmatprep.subr.bf16.mxu0 0
        %1244 = vmatpush1.bf16.msra.mxu0 %v1058
        %1245 = vmatprep.subr.bf16.mxu0 0
        %1246 = vmatpush1.bf16.msra.mxu0 %v1057
        %1247 = vmatprep.subr.bf16.mxu0 0
        %1248 = vmatpush1.bf16.msra.mxu0 %v1056
        %1249 = vmatprep.subr.bf16.mxu0 0
        %1250 = vmatpush2.bf16.msra.mxu0 %v1071
        %1251 = vmatprep.subr.bf16.mxu0 0
        %1252 = vmatpush2.bf16.msra.mxu0 %v1070
        %1253 = vmatprep.subr.bf16.mxu0 0
        %1254 = vmatpush2.bf16.msra.mxu0 %v1069
        %1255 = vmatprep.subr.bf16.mxu0 0
        %1256 = vmatpush2.bf16.msra.mxu0 %v1068
        %1257 = vmatprep.subr.bf16.mxu0 0
        %1258 = vmatpush2.bf16.msra.mxu0 %v1067
        %1259 = vmatprep.subr.bf16.mxu0 0
        %1260 = vmatpush2.bf16.msra.mxu0 %v1066
        %1261 = vmatprep.subr.bf16.mxu0 0
        %1262 = vmatpush2.bf16.msra.mxu0 %v1065
        %1263 = vmatprep.subr.bf16.mxu0 0
        %1264 = vmatpush2.bf16.msra.mxu0 %v1064
        %1265 = vmatprep.mubr.bf16.mxu0 %v719
        %1266 = vmatmul.mubr.bf16.gmra.mxu0 %v718
        %v1267 = vpop.f32.mrf.mxu0
        %v1268 = vadd.f32 %v1219, %v1267
        %v1269 = vpop.f32.mrf.mxu0
        %v1270 = vpop.f32.mrf.mxu0
        %v1271 = vadd.f32 %v1222, %v1270
        %v1272 = vpop.f32.mrf.mxu0
        %1273 = vmatprep.mubr.bf16.mxu0 %v728
        %1274 = vmatmul.mubr.bf16.gmra.mxu0 %v727
        %v1275 = vpop.f32.mrf.mxu0
        %v1276 = vadd.f32 %v1227, %v1275
        %v1277 = vpop.f32.mrf.mxu0
        %v1278 = vpop.f32.mrf.mxu0
        %v1279 = vadd.f32 %v1230, %v1278
        %v1280 = vpop.f32.mrf.mxu0
        %1281 = vdwg.mxu0
        %1282 = vmatprep.subr.bf16.mxu0 0
        %1283 = vmatpush1.bf16.msra.mxu0 %v1079
        %1284 = vmatprep.subr.bf16.mxu0 0
        %1285 = vmatpush1.bf16.msra.mxu0 %v1078
        %1286 = vmatprep.subr.bf16.mxu0 0
        %1287 = vmatpush1.bf16.msra.mxu0 %v1077
        %1288 = vmatprep.subr.bf16.mxu0 0
        %1289 = vmatpush1.bf16.msra.mxu0 %v1076
        %1290 = vmatprep.subr.bf16.mxu0 0
        %1291 = vmatpush1.bf16.msra.mxu0 %v1075
        %1292 = vmatprep.subr.bf16.mxu0 0
        %1293 = vmatpush1.bf16.msra.mxu0 %v1074
        %1294 = vmatprep.subr.bf16.mxu0 0
        %1295 = vmatpush1.bf16.msra.mxu0 %v1073
        %1296 = vmatprep.subr.bf16.mxu0 0
        %1297 = vmatpush1.bf16.msra.mxu0 %v1072
        %1298 = vmatprep.subr.bf16.mxu0 0
        %1299 = vmatpush2.bf16.msra.mxu0 %v1087
        %1300 = vmatprep.subr.bf16.mxu0 0
        %1301 = vmatpush2.bf16.msra.mxu0 %v1086
        %1302 = vmatprep.subr.bf16.mxu0 0
        %1303 = vmatpush2.bf16.msra.mxu0 %v1085
        %1304 = vmatprep.subr.bf16.mxu0 0
        %1305 = vmatpush2.bf16.msra.mxu0 %v1084
        %1306 = vmatprep.subr.bf16.mxu0 0
        %1307 = vmatpush2.bf16.msra.mxu0 %v1083
        %1308 = vmatprep.subr.bf16.mxu0 0
        %1309 = vmatpush2.bf16.msra.mxu0 %v1082
        %1310 = vmatprep.subr.bf16.mxu0 0
        %1311 = vmatpush2.bf16.msra.mxu0 %v1081
        %1312 = vmatprep.subr.bf16.mxu0 0
        %1313 = vmatpush2.bf16.msra.mxu0 %v1080
        %1314 = vmatprep.mubr.bf16.mxu0 %v721
        %1315 = vmatmul.mubr.bf16.gmra.mxu0 %v720
        %v1316 = vpop.f32.mrf.mxu0
        %v1317 = vadd.f32 %v1268, %v1316
        %v1318 = vpop.f32.mrf.mxu0
        %v1319 = vpop.f32.mrf.mxu0
        %v1320 = vadd.f32 %v1271, %v1319
        %v1321 = vpop.f32.mrf.mxu0
        %1322 = vmatprep.mubr.bf16.mxu0 %v730
        %1323 = vmatmul.mubr.bf16.gmra.mxu0 %v729
        %v1324 = vpop.f32.mrf.mxu0
        %v1325 = vadd.f32 %v1276, %v1324
        %v1326 = vpop.f32.mrf.mxu0
        %v1327 = vpop.f32.mrf.mxu0
        %v1328 = vadd.f32 %v1279, %v1327
        %v1329 = vpop.f32.mrf.mxu0
        %1330 = vdwg.mxu0
        %1331 = vmatprep.subr.bf16.mxu0 0
        %1332 = vmatpush1.bf16.msra.mxu0 %v1095
        %1333 = vmatprep.subr.bf16.mxu0 0
        %1334 = vmatpush1.bf16.msra.mxu0 %v1094
        %1335 = vmatprep.subr.bf16.mxu0 0
        %1336 = vmatpush1.bf16.msra.mxu0 %v1093
        %1337 = vmatprep.subr.bf16.mxu0 0
        %1338 = vmatpush1.bf16.msra.mxu0 %v1092
        %1339 = vmatprep.subr.bf16.mxu0 0
        %1340 = vmatpush1.bf16.msra.mxu0 %v1091
        %1341 = vmatprep.subr.bf16.mxu0 0
        %1342 = vmatpush1.bf16.msra.mxu0 %v1090
        %1343 = vmatprep.subr.bf16.mxu0 0
        %1344 = vmatpush1.bf16.msra.mxu0 %v1089
        %1345 = vmatprep.subr.bf16.mxu0 0
        %1346 = vmatpush1.bf16.msra.mxu0 %v1088
        %1347 = vmatprep.subr.bf16.mxu0 0
        %1348 = vmatpush2.bf16.msra.mxu0 %v1103
        %1349 = vmatprep.subr.bf16.mxu0 0
        %1350 = vmatpush2.bf16.msra.mxu0 %v1102
        %1351 = vmatprep.subr.bf16.mxu0 0
        %1352 = vmatpush2.bf16.msra.mxu0 %v1101
        %1353 = vmatprep.subr.bf16.mxu0 0
        %1354 = vmatpush2.bf16.msra.mxu0 %v1100
        %1355 = vmatprep.subr.bf16.mxu0 0
        %1356 = vmatpush2.bf16.msra.mxu0 %v1099
        %1357 = vmatprep.subr.bf16.mxu0 0
        %1358 = vmatpush2.bf16.msra.mxu0 %v1098
        %1359 = vmatprep.subr.bf16.mxu0 0
        %1360 = vmatpush2.bf16.msra.mxu0 %v1097
        %1361 = vmatprep.subr.bf16.mxu0 0
        %1362 = vmatpush2.bf16.msra.mxu0 %v1096
        %1363 = vmatprep.mubr.bf16.mxu0 %v723
        %1364 = vmatmul.mubr.bf16.gmra.mxu0 %v722
        %v1365 = vpop.f32.mrf.mxu0
        %v1366 = vadd.f32 %v1317, %v1365
        %v1367 = vpop.f32.mrf.mxu0
        %v1368 = vpop.f32.mrf.mxu0
        %v1369 = vadd.f32 %v1320, %v1368
        %v1370 = vpop.f32.mrf.mxu0
        %1371 = vmatprep.mubr.bf16.mxu0 %v732
        %1372 = vmatmul.mubr.bf16.gmra.mxu0 %v731
        %v1373 = vpop.f32.mrf.mxu0
        %v1374 = vadd.f32 %v1325, %v1373
        %v1375 = vpop.f32.mrf.mxu0
        %v1376 = vpop.f32.mrf.mxu0
        %v1377 = vadd.f32 %v1328, %v1376
        %v1378 = vpop.f32.mrf.mxu0
        %1379 = vdwg.mxu0
        %1380 = vmatprep.subr.bf16.mxu0 0
        %1381 = vmatpush1.bf16.msra.mxu0 %v1111
        %1382 = vmatprep.subr.bf16.mxu0 0
        %1383 = vmatpush1.bf16.msra.mxu0 %v1110
        %1384 = vmatprep.subr.bf16.mxu0 0
        %1385 = vmatpush1.bf16.msra.mxu0 %v1109
        %1386 = vmatprep.subr.bf16.mxu0 0
        %1387 = vmatpush1.bf16.msra.mxu0 %v1108
        %1388 = vmatprep.subr.bf16.mxu0 0
        %1389 = vmatpush1.bf16.msra.mxu0 %v1107
        %1390 = vmatprep.subr.bf16.mxu0 0
        %1391 = vmatpush1.bf16.msra.mxu0 %v1106
        %1392 = vmatprep.subr.bf16.mxu0 0
        %1393 = vmatpush1.bf16.msra.mxu0 %v1105
        %1394 = vmatprep.subr.bf16.mxu0 0
        %1395 = vmatpush1.bf16.msra.mxu0 %v1104
        %1396 = vmatprep.subr.bf16.mxu0 0
        %1397 = vmatpush2.bf16.msra.mxu0 0
        %1398 = vmatprep.subr.bf16.mxu0 0
        %1399 = vmatpush2.bf16.msra.mxu0 0
        %1400 = vmatprep.subr.bf16.mxu0 0
        %1401 = vmatpush2.bf16.msra.mxu0 0
        %1402 = vmatprep.subr.bf16.mxu0 0
        %1403 = vmatpush2.bf16.msra.mxu0 0
        %1404 = vmatprep.subr.bf16.mxu0 0
        %1405 = vmatpush2.bf16.msra.mxu0 0
        %1406 = vmatprep.subr.bf16.mxu0 0
        %1407 = vmatpush2.bf16.msra.mxu0 0
        %1408 = vmatprep.subr.bf16.mxu0 0
        %1409 = vmatpush2.bf16.msra.mxu0 0
        %1410 = vmatprep.subr.bf16.mxu0 0
        %1411 = vmatpush2.bf16.msra.mxu0 0
        %1412 = vmatprep.mubr.bf16.mxu0 0
        %1413 = vmatmul.mubr.bf16.gmra.mxu0 %v724
        %v1414 = vpop.f32.mrf.mxu0
        %v1415 = vadd.f32 %v1366, %v1414
        %v1416 = vpop.f32.mrf.mxu0
        %v1417 = vpop.f32.mrf.mxu0
        %v1418 = vadd.f32 %v1369, %v1417
        %v1419 = vpop.f32.mrf.mxu0
        %1420 = vmatprep.mubr.bf16.mxu0 0
        %1421 = vmatmul.mubr.bf16.gmra.mxu0 %v733
        %v1422 = vpop.f32.mrf.mxu0
        %v1423 = vadd.f32 %v1374, %v1422
        %v1424 = vpop.f32.mrf.mxu0
        %v1425 = vpop.f32.mrf.mxu0
        %v1426 = vadd.f32 %v1377, %v1425
        %v1427 = vpop.f32.mrf.mxu0
        %1428 = vdwg.mxu0
        %1429 = vst [vmem:[%s270] sm:$0xff] %v1415
        %1430 = vst [vmem:[%s270 + $0x8] sm:$0xff] %v1418
        %1431 = vst [vmem:[%s270 + $0x10] sm:$0xff] %v1423
        %1432 = vst [vmem:[%s270 + $0x18] sm:$0xff] %v1426
        %s1433 = sand.u32 %s142, 1
        %s1434 = scalar_lea.sflag [#allocation4], %s1433
        %s1435 = sand.u32 %s142, 1
        %s1436 = smul.addr %s1435, 32
        %s1437 = scalar_lea.vmem [#allocation3], %s1436
        // Predicated region
        $region37: #{downsample_block.1} parent=35 // pred_check
          %p1438 = pneg %p152
        $region38: #{downsample_block.1} parent=35 // pred_check_branch
          %1440 = sbr.rel (%p1438) target = $region40
        $region39: #{downsample_block.1} parent=35 // pred_region
          %s1441 = smul.u32 4, %s23
          %s1443 = ssub.s32 512, 512
          %1444 = vsyncadd %s1434, %s1443
          %s1445 = smul.addr %s22, 8
          %s1446 = sadd.s32 %s1441, %s1445
          %s1447 = smul.addr %s1446, 128
          %s1448 = scalar_lea.hbm %s4, %s1447
          %s1449 = sshll.u32 %s1437, 4
          %s1450 = int_to_ptr.vmem [resolvable:$true] %s1449
          %1455 = dma.vmem_to_hbm [thread:$0]  %s1450, 512, %s1448, %s1434, 128, 128, 8
        $region40: #{downsample_block.1} parent=35 // pred_fallthru
          _
      $region36: #{downsample_block.1} parent=5 // pred_fallthru
        _
      %p1456 = scmp.le.s32.totalorder 2, %s13
      // Predicated region
      $region41: #{downsample_block.1} parent=5 // pred_check
        %p1457 = pneg %p1456
      $region42: #{downsample_block.1} parent=5 // pred_check_branch
        %1459 = sbr.rel (%p1457) target = $region44
      $region43: #{downsample_block.1} parent=5 // pred_region
        %s1460 = ssub.s32 %s13, 2
        // Predicated region
        $region45: #{downsample_block.1} parent=43 // pred_check
          %p1461 = pneg %p158
        $region46: #{downsample_block.1} parent=43 // pred_check_branch
          %1463 = sbr.rel (%p1461) target = $region48
        $region47: #{downsample_block.1} parent=43 // pred_region
          %s1464 = sand.u32 %s143, 1
          %s1465 = scalar_lea.sflag [#allocation4], %s1464
          %s1466 = sand.u32 %s143, 1
          %s1467 = smul.addr %s1466, 32
          %s1468 = scalar_lea.vmem [#allocation3], %s1467
          %1469 = dma.done %s1465, 512
        $region48: #{downsample_block.1} parent=43 // pred_fallthru
          _
      $region44: #{downsample_block.1} parent=5 // pred_fallthru
        _
    $region6: #{downsample_block.1} parent=1 // loop_footer
      %s17 = sadd.s32 1, %s13
    $region7: #{downsample_block.1} parent=1 // loop_footer_branch
      %12 = sbr.rel target = $region3
    $region8: #{downsample_block.1} parent=1 // loop_exit
      _
    %1470 = vsyncpa [#allocation4], 1
    %s1471 = scalar_lea.sflag [#allocation4], 1
    %1472 = vsyncpa %s1471, 1

</llo_original>
